<compile_context>
chip_gen: v7x
topology: tpu7x:2x2x1
jax: 0.10.0
libtpu: 0.0.40
codegen_flags: <defaults>
</compile_context>

<pallas_src>
import jax
import jax.numpy as jnp
from jax.experimental import pallas as pl
from jax.experimental.pallas import tpu as pltpu


_LANES = 128
_MAX_ROW_TILE = 4096  # 4096*128*4B = 2 MiB per f32 input block (1 MiB for bf16)


def _round_up(x, m):
    return ((x + m - 1) // m) * m


def _dice_bce_partials_kernel(p_ref, t_ref, o_ref):
    # p_ref/t_ref: (1, R_TILE, 128) input blocks (native dtype).
    # o_ref:       (1, 4, 128) f32, resident per sample across the j axis.
    j = pl.program_id(1)

    @pl.when(j == 0)
    def _init():
        o_ref[...] = jnp.zeros_like(o_ref)

    p = p_ref[0].astype(jnp.float32)          # (R_TILE, 128)
    t = t_ref[0].astype(jnp.float32)

    # BCE elementwise, torch-style clamp of log terms at -100 (clamp before the
    # multiply so t=0 * log(0) padding contributes exactly 0).
    # TODO(synk): if targets are guaranteed binary, a single-log variant
    # (jnp.where(t > 0.5, p, 1 - p)) would halve EUP traffic on v7x.
    log_p = jnp.maximum(jnp.log(p), -100.0)
    log_1mp = jnp.maximum(jnp.log(1.0 - p), -100.0)
    bce = -(t * log_p + (1.0 - t) * log_1mp)

    # Per-lane partial sums (reduce over the sublane axis only; the 128-lane
    # reduction is finished in plain JAX in the wrapper).
    parts = jnp.concatenate(
        [
            jnp.sum(bce, axis=0, keepdims=True),      # row 0: bce sum
            jnp.sum(p * t, axis=0, keepdims=True),    # row 1: intersection
            jnp.sum(p, axis=0, keepdims=True),        # row 2: sum(p)
            jnp.sum(t, axis=0, keepdims=True),        # row 3: sum(t)
        ],
        axis=0,
    )                                                 # (4, 128) f32
    o_ref[...] += parts[None]


def dice_bce_loss(preds, true, w=0.5, smooth=1.0):
    """DiceBCELoss forward. preds, true: (N, C, H, W); preds in (0, 1)."""
    N = preds.shape[0]
    D = 1
    for s in preds.shape[1:]:
        D *= s

    # Tiling: view each sample as (r_pad, 128); tile rows in chunks of r_tile.
    R = pl.cdiv(D, _LANES)                      # 128-wide rows per sample
    grid_d = pl.cdiv(R, _MAX_ROW_TILE)          # reduction-axis tile count
    r_tile = _round_up(pl.cdiv(R, grid_d), 8)   # sublane-aligned tile height
    r_pad = grid_d * r_tile
    d_pad = r_pad * _LANES

    def prep(x):
        x = x.reshape(N, D)                     # keep native dtype (bf16 OK)
        if d_pad != D:
            x = jnp.pad(x, ((0, 0), (0, d_pad - D)))  # zeros: exact 0 contribution
        return x.reshape(N, r_pad, _LANES)

    p3 = prep(preds)
    t3 = prep(true)

    in_spec = pl.BlockSpec((1, r_tile, _LANES), lambda i, j: (i, j, 0))
    bytes_in = N * d_pad * (p3.dtype.itemsize + t3.dtype.itemsize)
    cost = pl.CostEstimate(
        flops=10 * N * d_pad,
        transcendentals=2 * N * d_pad,
        bytes_accessed=bytes_in + N * 4 * _LANES * 4,
    )

    partials = pl.pallas_call(
        _dice_bce_partials_kernel,
        out_shape=jax.ShapeDtypeStruct((N, 4, _LANES), jnp.float32),
        grid_spec=pltpu.PrefetchScalarGridSpec(
            num_scalar_prefetch=0,
            grid=(N, grid_d),
            in_specs=[in_spec, in_spec],
            out_specs=pl.BlockSpec((1, 4, _LANES), lambda i, j: (i, 0, 0)),
        ),
        compiler_params=pltpu.CompilerParams(
            dimension_semantics=("parallel", "arbitrary"),
            vmem_limit_bytes=32 * 1024 * 1024,
        ),
        cost_estimate=cost,
    )(p3, t3)

    # Tiny epilogue in plain JAX: finish lane reductions and combine.
    sums = jnp.sum(partials, axis=-1)           # (N, 4)
    bce = jnp.sum(sums[:, 0]) / jnp.float32(N * D)          # mean over ALL elems
    dice_score = (2.0 * sums[:, 1] + smooth) / (sums[:, 2] + sums[:, 3] + smooth)
    dice_loss = 1.0 - jnp.mean(dice_score)                   # reduction='mean'
    return w * bce + (1.0 - w) * dice_loss


if __name__ == "__main__":
    key = jax.random.PRNGKey(0)
    k1, k2 = jax.random.split(key)

    N, C, H, W = 2, 4, 16, 16
    # preds: probabilities in (0,1); true: binary mask as floats.
    preds = jax.nn.sigmoid(jax.random.normal(k1, (N, C, H, W), dtype=jnp.float32))
    true = jax.random.bernoulli(k2, p=0.5, shape=(N, C, H, W)).astype(jnp.float32)

    loss = dice_bce_loss(preds, true)
    jax.block_until_ready(loss)

    # Pure-JAX reference check (same math, no Pallas).
    p = preds.reshape(N, -1).astype(jnp.float32)
    t = true.reshape(N, -1).astype(jnp.float32)
    bce_ref = jnp.mean(-(t * jnp.maximum(jnp.log(p), -100.0)
                         + (1 - t) * jnp.maximum(jnp.log(1 - p), -100.0)))
    dice_ref = 1.0 - jnp.mean((2 * jnp.sum(p * t, -1) + 1.0)
                              / (jnp.sum(p, -1) + jnp.sum(t, -1) + 1.0))
    ref = 0.5 * bce_ref + 0.5 * dice_ref
    assert jnp.allclose(loss, ref, rtol=1e-5, atol=1e-5), (loss, ref)

    print("KERNEL_OK")
</pallas_src>

<mosaic_0001>
module attributes {stable_mosaic.version = 11 : i64} {
  func.func @_dice_bce_partials_kernel(%arg0: i32, %arg1: i32, %arg2: memref<1x8x128xf32, #tpu.memory_space<vmem>>, %arg3: memref<1x8x128xf32, #tpu.memory_space<vmem>>, %arg4: memref<1x4x128xf32, #tpu.memory_space<vmem>>) attributes {dimension_semantics = [#tpu.dimension_semantics<parallel>, #tpu.dimension_semantics<arbitrary>], iteration_bounds = array<i64: 2, 1>, scalar_prefetch = 0 : i64, scratch_operands = 0 : i64, tpu.core_type = #tpu.core_type<tc>, window_params = [{transform_indices = @transform_0, window_bounds = array<i64: 1, 8, 128>}, {transform_indices = @transform_1, window_bounds = array<i64: 1, 8, 128>}, {transform_indices = @transform_2, window_bounds = array<i64: 1, 4, 128>}]} {
    %c0_i32 = arith.constant 0 : i32
    %0 = arith.cmpi eq, %arg1, %c0_i32 : i32
    %1 = arith.extui %0 : i1 to i32
    %c0_i32_0 = arith.constant 0 : i32
    %2 = arith.cmpi ne, %1, %c0_i32_0 : i32
    scf.if %2 {
      %cst_20 = arith.constant 0.000000e+00 : f32
      %36 = vector.broadcast %cst_20 : f32 to vector<1x4x128xf32>
      %c0_21 = arith.constant 0 : index
      %c0_22 = arith.constant 0 : index
      %c0_23 = arith.constant 0 : index
      %37 = vector.load %arg4[%c0_21, %c0_22, %c0_23] : memref<1x4x128xf32, #tpu.memory_space<vmem>>, vector<1x4x128xf32>
      tpu.vector_store %arg4[%c0_21, %c0_22, %c0_23], %36 {strides = array<i32>} : memref<1x4x128xf32, #tpu.memory_space<vmem>>, vector<1x4x128xf32>,
    } else {
    }
    %c0 = arith.constant 0 : index
    %c0_1 = arith.constant 0 : index
    %c0_2 = arith.constant 0 : index
    %3 = vector.load %arg2[%c0, %c0_1, %c0_2] : memref<1x8x128xf32, #tpu.memory_space<vmem>>, vector<1x8x128xf32>
    %4 = vector.shape_cast %3 : vector<1x8x128xf32> to vector<8x128xf32>
    %c0_3 = arith.constant 0 : index
    %c0_4 = arith.constant 0 : index
    %c0_5 = arith.constant 0 : index
    %5 = vector.load %arg3[%c0_3, %c0_4, %c0_5] : memref<1x8x128xf32, #tpu.memory_space<vmem>>, vector<1x8x128xf32>
    %6 = vector.shape_cast %5 : vector<1x8x128xf32> to vector<8x128xf32>
    %7 = math.log %4 : vector<8x128xf32>
    %cst = arith.constant -1.000000e+02 : f32
    %8 = vector.broadcast %cst : f32 to vector<8x128xf32>
    %9 = arith.maximumf %7, %8 : vector<8x128xf32>
    %cst_6 = arith.constant 1.000000e+00 : f32
    %10 = vector.broadcast %cst_6 : f32 to vector<8x128xf32>
    %11 = arith.subf %10, %4 : vector<8x128xf32>
    %12 = math.log %11 : vector<8x128xf32>
    %cst_7 = arith.constant -1.000000e+02 : f32
    %13 = vector.broadcast %cst_7 : f32 to vector<8x128xf32>
    %14 = arith.maximumf %12, %13 : vector<8x128xf32>
    %15 = arith.mulf %6, %9 : vector<8x128xf32>
    %cst_8 = arith.constant 1.000000e+00 : f32
    %16 = vector.broadcast %cst_8 : f32 to vector<8x128xf32>
    %17 = arith.subf %16, %6 : vector<8x128xf32>
    %18 = arith.mulf %17, %14 : vector<8x128xf32>
    %19 = arith.addf %15, %18 : vector<8x128xf32>
    %cst_9 = arith.constant 0.000000e+00 : f32
    %20 = vector.broadcast %cst_9 : f32 to vector<8x128xf32>
    %21 = arith.subf %20, %19 : vector<8x128xf32>
    %cst_10 = arith.constant dense<0.000000e+00> : vector<128xf32>
    %22 = vector.multi_reduction <add>, %21, %cst_10 [0] : vector<8x128xf32> to vector<128xf32>
    %23 = vector.shape_cast %22 : vector<128xf32> to vector<1x128xf32>
    %24 = arith.mulf %4, %6 : vector<8x128xf32>
    %cst_11 = arith.constant dense<0.000000e+00> : vector<128xf32>
    %25 = vector.multi_reduction <add>, %24, %cst_11 [0] : vector<8x128xf32> to vector<128xf32>
    %26 = vector.shape_cast %25 : vector<128xf32> to vector<1x128xf32>
    %cst_12 = arith.constant dense<0.000000e+00> : vector<128xf32>
    %27 = vector.multi_reduction <add>, %4, %cst_12 [0] : vector<8x128xf32> to vector<128xf32>
    %28 = vector.shape_cast %27 : vector<128xf32> to vector<1x128xf32>
    %cst_13 = arith.constant dense<0.000000e+00> : vector<128xf32>
    %29 = vector.multi_reduction <add>, %6, %cst_13 [0] : vector<8x128xf32> to vector<128xf32>
    %30 = vector.shape_cast %29 : vector<128xf32> to vector<1x128xf32>
    %31 = tpu.concatenate %23, %26, %28, %30 in 0 : vector<1x128xf32>, vector<1x128xf32>, vector<1x128xf32>, vector<1x128xf32> -> vector<4x128xf32>
    %c0_14 = arith.constant 0 : index
    %c0_15 = arith.constant 0 : index
    %c0_16 = arith.constant 0 : index
    %32 = vector.load %arg4[%c0_14, %c0_15, %c0_16] : memref<1x4x128xf32, #tpu.memory_space<vmem>>, vector<1x4x128xf32>
    %33 = vector.shape_cast %31 : vector<4x128xf32> to vector<1x4x128xf32>
    %34 = arith.addf %32, %33 : vector<1x4x128xf32>
    %c0_17 = arith.constant 0 : index
    %c0_18 = arith.constant 0 : index
    %c0_19 = arith.constant 0 : index
    %35 = vector.load %arg4[%c0_17, %c0_18, %c0_19] : memref<1x4x128xf32, #tpu.memory_space<vmem>>, vector<1x4x128xf32>
    tpu.vector_store %arg4[%c0_17, %c0_18, %c0_19], %34 {strides = array<i32>} : memref<1x4x128xf32, #tpu.memory_space<vmem>>, vector<1x4x128xf32>,
    return
  }
  func.func @transform_0(%arg0: i32, %arg1: i32) -> (i32, i32, i32) {
    %c0_i32 = arith.constant 0 : i32
    %c0_i32_0 = arith.constant 0 : i32
    return %arg0, %arg1, %c0_i32 : i32, i32, i32
  }
  func.func @transform_1(%arg0: i32, %arg1: i32) -> (i32, i32, i32) {
    %c0_i32 = arith.constant 0 : i32
    %c0_i32_0 = arith.constant 0 : i32
    return %arg0, %arg1, %c0_i32 : i32, i32, i32
  }
  func.func @transform_2(%arg0: i32, %arg1: i32) -> (i32, i32, i32) {
    %c0_i32 = arith.constant 0 : i32
    %c0_i32_0 = arith.constant 0 : i32
    %c0_i32_1 = arith.constant 0 : i32
    return %arg0, %c0_i32, %c0_i32_0 : i32, i32, i32
  }
}

</mosaic_0001>

<llo_original>
// kernel: tpu_custom_call.1
$region0: #{tpu_custom_call.1}
  #allocation0 [shape = 'u32[]', space=smem, size = 0x4, offset = 0x4, fixed_abs, tag = 'smem constant byte address 0x4 - core index']
  #allocation1 [shape = 'u32[144,128]{1,0:T(1,128)}', space=vmem, size = 0x12000, scoped, tag = 'internal scratch']
  %s0 = inlined_call_operand.hbm [shape: f32[2,8,128], index: 0, kind: input, shape index: {}]
  %s1 = inlined_call_operand.hbm [shape: f32[2,8,128], index: 1, kind: input, shape index: {}]
  %s2 = inlined_call_operand.hbm [shape: f32[2,4,128], index: 2, kind: output, shape index: {}]
  %s3 = sld [smem:[#allocation0]]
  $region53: #{tpu_custom_call.1} parent=0
    _
  %s5 = ssub.s32 1, %s3
  %s6 = scalar_select 0, %s5, %s3
  $region1: #{tpu_custom_call.1} parent=0
    #allocation2 [shape = 'u8[8192]{0}', space=vmem, size = 0x2000, scoped, tag = 'input window, operand 0']
    #allocation3 [shape = 's32[2]{0}', space=sflag, size = 0x8, scoped, tag = 'scoped memory for tpu_custom_call.1']
    #allocation4 [shape = 's32[2]{0}', space=sflag, size = 0x8, scoped, tag = 'scoped memory for tpu_custom_call.1']
    #allocation5 [shape = 'u8[8192]{0}', space=vmem, size = 0x2000, scoped, tag = 'input window, operand 1']
    #allocation6 [shape = 's32[2]{0}', space=sflag, size = 0x8, scoped, tag = 'scoped memory for tpu_custom_call.1']
    #allocation7 [shape = 'u8[4096]{0}', space=vmem, size = 0x1000, scoped, tag = 'output window, operand 0']
    %7 = vsyncpa [#allocation3], 0
    %s8 = scalar_lea.sflag [#allocation3], 1
    %9 = vsyncpa %s8, 0
    %10 = vsyncpa [#allocation6], 0
    %s11 = scalar_lea.sflag [#allocation6], 1
    %12 = vsyncpa %s11, 0
    %13 = vsyncpa [#allocation4], 0
    %s14 = scalar_lea.sflag [#allocation4], 1
    %15 = vsyncpa %s14, 0
    loop: start=0, step=1, limit=4
    $region2: #{tpu_custom_call.1} parent=1 // loop_pre_header
      _
    $region3: #{tpu_custom_call.1} parent=1 // loop_header
      %s17 = sphi 0, %s21
      %p18 = scmp.ge.s32.totalorder %s17, 4
      %s24 = sphi 0, %s36
      %s25 = sphi 0, %s32
      %s26 = sphi 0, %s24
      %s27 = sphi 0, %s25
      %s28 = sphi 0, %s26
      %s29 = sphi 0, %s27
      %s41 = sphi 0, %s43
      %s44 = sphi 0, %s41
      %s45 = sphi 0, %s44
      %s61 = sphi 0, %s45
      %s69 = sphi 0, %s71
      %s72 = sphi 0, %s69
      %s73 = sphi 0, %s72
      %s89 = sphi 0, %s73
      %s95 = sphi 0, %s97
      %s98 = sphi 0, %s95
      %s99 = sphi 0, %s98
      %s115 = sphi 0, %s99
    $region4: #{tpu_custom_call.1} parent=1 // loop_header_branch
      %20 = sbr.rel (%p18) target = $region8
    $region5: #{tpu_custom_call.1} parent=1 // loop_body
      %s22 = ssub.s32 %s17, 1
      %s23 = ssub.s32 %s17, 2
      %s30 = sadd.s32 1, %s25
      %p31 = scmp.ge.s32.totalorder %s30, 1
      %s32 = scalar_select %p31, 0, %s30
      %s33 = sadd.s32 1, %s24
      %s34 = scalar_select %p31, %s33, %s24
      %p35 = scmp.ge.s32.totalorder %s34, 2
      %s36 = scalar_select %p35, 0, %s34
      %s37 = ssub.s32 %s24, %s36
      %s38 = ssub.s32 %s25, %s32
      %s39 = sor.u32 %s37, %s38
      %p40 = scmp.eq.s32.totalorder %s39, 0
      %s42 = sadd.s32 %s41, 1
      %s43 = scalar_select %p40, %s41, %s42
      %p46 = pneg %p40
      %p47 = scmp.eq.s32.totalorder %s17, 1
      %p48 = por %p46, %p47
      %p49 = scmp.ne.s32.totalorder %s41, %s44
      %p50 = scmp.eq.s32.totalorder %s17, 0
      %p51 = por %p49, %p50
      %p52 = scmp.ne.s32.totalorder %s41, %s44
      %p53 = scmp.eq.s32.totalorder %s22, 1
      %p54 = por %p52, %p53
      %p55 = scmp.ne.s32.totalorder %s44, %s45
      %p56 = scmp.eq.s32.totalorder %s22, 0
      %p57 = por %p55, %p56
      %p58 = scmp.ne.s32.totalorder %s44, %s45
      %p59 = scmp.eq.s32.totalorder %s23, 1
      %p60 = por %p58, %p59
      %p62 = scmp.ne.s32.totalorder %s45, %s61
      %p63 = scmp.eq.s32.totalorder %s23, 0
      %p64 = por %p62, %p63
      %s65 = ssub.s32 %s24, %s36
      %s66 = ssub.s32 %s25, %s32
      %s67 = sor.u32 %s65, %s66
      %p68 = scmp.eq.s32.totalorder %s67, 0
      %s70 = sadd.s32 %s69, 1
      %s71 = scalar_select %p68, %s69, %s70
      %p74 = pneg %p68
      %p75 = scmp.eq.s32.totalorder %s17, 1
      %p76 = por %p74, %p75
      %p77 = scmp.ne.s32.totalorder %s69, %s72
      %p78 = scmp.eq.s32.totalorder %s17, 0
      %p79 = por %p77, %p78
      %p80 = scmp.ne.s32.totalorder %s69, %s72
      %p81 = scmp.eq.s32.totalorder %s22, 1
      %p82 = por %p80, %p81
      %p83 = scmp.ne.s32.totalorder %s72, %s73
      %p84 = scmp.eq.s32.totalorder %s22, 0
      %p85 = por %p83, %p84
      %p86 = scmp.ne.s32.totalorder %s72, %s73
      %p87 = scmp.eq.s32.totalorder %s23, 1
      %p88 = por %p86, %p87
      %p90 = scmp.ne.s32.totalorder %s73, %s89
      %p91 = scmp.eq.s32.totalorder %s23, 0
      %p92 = por %p90, %p91
      %s93 = ssub.s32 %s24, %s36
      %p94 = scmp.eq.s32.totalorder %s93, 0
      %s96 = sadd.s32 %s95, 1
      %s97 = scalar_select %p94, %s95, %s96
      %p100 = pneg %p94
      %p101 = scmp.eq.s32.totalorder %s17, 1
      %p102 = por %p100, %p101
      %p103 = scmp.ne.s32.totalorder %s95, %s98
      %p104 = scmp.eq.s32.totalorder %s17, 0
      %p105 = por %p103, %p104
      %p106 = scmp.ne.s32.totalorder %s95, %s98
      %p107 = scmp.eq.s32.totalorder %s22, 1
      %p108 = por %p106, %p107
      %p109 = scmp.ne.s32.totalorder %s98, %s99
      %p110 = scmp.eq.s32.totalorder %s22, 0
      %p111 = por %p109, %p110
      %p112 = scmp.ne.s32.totalorder %s98, %s99
      %p113 = scmp.eq.s32.totalorder %s23, 1
      %p114 = por %p112, %p113
      %p116 = scmp.ne.s32.totalorder %s99, %s115
      %p117 = scmp.eq.s32.totalorder %s23, 0
      %p118 = por %p116, %p117
      %p119 = scmp.le.s32.totalorder 1, %s17
      %p120 = scmp.lt.s32.totalorder %s17, 3
      %p121 = pnand %p119, %p120
      %p122 = pneg %p121
      // Predicated region
      $region9: #{tpu_custom_call.1} parent=5 // pred_check
        _
      $region10: #{tpu_custom_call.1} parent=5 // pred_check_branch
        %124 = sbr.rel (%p121) target = $region12
      $region11: #{tpu_custom_call.1} parent=5 // pred_region
        %s125 = ssub.s32 %s17, 1
      $region12: #{tpu_custom_call.1} parent=5 // pred_fallthru
        _
      %p126 = scmp.lt.s32.totalorder %s17, 2
      // Predicated region
      $region13: #{tpu_custom_call.1} parent=5 // pred_check
        %p127 = pneg %p126
      $region14: #{tpu_custom_call.1} parent=5 // pred_check_branch
        %129 = sbr.rel (%p127) target = $region16
      $region15: #{tpu_custom_call.1} parent=5 // pred_region
        // Predicated region
        $region17: #{tpu_custom_call.1} parent=15 // pred_check
          %p130 = pneg %p51
        $region18: #{tpu_custom_call.1} parent=15 // pred_check_branch
          %132 = sbr.rel (%p130) target = $region20
        $region19: #{tpu_custom_call.1} parent=15 // pred_region
          %s133 = sand.u32 %s41, 1
          %s134 = scalar_lea.sflag [#allocation3], %s133
          %s135 = sand.u32 %s41, 1
          %s136 = smul.addr %s135, 8
          %s137 = scalar_lea.vmem [#allocation2], %s136
          %s139 = ssub.s32 128, 128
          %140 = vsyncadd %s134, %s139
          %s141 = sadd.s32 %s25, %s24
          %s142 = smul.addr %s141, 128
          %s143 = scalar_lea.hbm %s0, %s142
          %s145 = sshll.u32 %s137, 4
          %s146 = int_to_ptr.vmem [resolvable:$true] %s145
          %148 = dma.hbm_to_vmem [thread:$0]  %s143, 128, %s146, %s134
        $region20: #{tpu_custom_call.1} parent=15 // pred_fallthru
          _
        // Predicated region
        $region21: #{tpu_custom_call.1} parent=15 // pred_check
          %p149 = pneg %p79
        $region22: #{tpu_custom_call.1} parent=15 // pred_check_branch
          %151 = sbr.rel (%p149) target = $region24
        $region23: #{tpu_custom_call.1} parent=15 // pred_region
          %s152 = sand.u32 %s69, 1
          %s153 = scalar_lea.sflag [#allocation6], %s152
          %s154 = sand.u32 %s69, 1
          %s155 = smul.addr %s154, 8
          %s156 = scalar_lea.vmem [#allocation5], %s155
          %s158 = ssub.s32 128, 128
          %159 = vsyncadd %s153, %s158
          %s160 = sadd.s32 %s25, %s24
          %s161 = smul.addr %s160, 128
          %s162 = scalar_lea.hbm %s1, %s161
          %s164 = sshll.u32 %s156, 4
          %s165 = int_to_ptr.vmem [resolvable:$true] %s164
          %167 = dma.hbm_to_vmem [thread:$0]  %s162, 128, %s165, %s153
        $region24: #{tpu_custom_call.1} parent=15 // pred_fallthru
          _
      $region16: #{tpu_custom_call.1} parent=5 // pred_fallthru
        _
      %p168 = scmp.le.s32.totalorder 1, %s17
      %p169 = scmp.lt.s32.totalorder %s17, 3
      %p170 = pnand %p168, %p169
      %p171 = pneg %p170
      // Predicated region
      $region25: #{tpu_custom_call.1} parent=5 // pred_check
        _
      $region26: #{tpu_custom_call.1} parent=5 // pred_check_branch
        %173 = sbr.rel (%p170) target = $region28
      $region27: #{tpu_custom_call.1} parent=5 // pred_region
        %s174 = ssub.s32 %s17, 1
        %s175 = sand.u32 %s44, 1
        %s176 = scalar_lea.sflag [#allocation3], %s175
        %s177 = sand.u32 %s44, 1
        %s178 = smul.addr %s177, 8
        %s179 = scalar_lea.vmem [#allocation2], %s178
        // Predicated region
        $region29: #{tpu_custom_call.1} parent=27 // pred_check
          %p180 = pneg %p57
        $region30: #{tpu_custom_call.1} parent=27 // pred_check_branch
          %182 = sbr.rel (%p180) target = $region32
        $region31: #{tpu_custom_call.1} parent=27 // pred_region
          %183 = dma.done %s176, 128
        $region32: #{tpu_custom_call.1} parent=27 // pred_fallthru
          _
        %s184 = sand.u32 %s72, 1
        %s185 = scalar_lea.sflag [#allocation6], %s184
        %s186 = sand.u32 %s72, 1
        %s187 = smul.addr %s186, 8
        %s188 = scalar_lea.vmem [#allocation5], %s187
        // Predicated region
        $region33: #{tpu_custom_call.1} parent=27 // pred_check
          %p189 = pneg %p85
        $region34: #{tpu_custom_call.1} parent=27 // pred_check_branch
          %191 = sbr.rel (%p189) target = $region36
        $region35: #{tpu_custom_call.1} parent=27 // pred_region
          %192 = dma.done %s185, 128
        $region36: #{tpu_custom_call.1} parent=27 // pred_fallthru
          _
        %s193 = sand.u32 %s44, 1
        %s194 = scalar_lea.sflag [#allocation3], %s193
        %s195 = sand.u32 %s44, 1
        %s196 = smul.addr %s195, 8
        %s197 = scalar_lea.vmem [#allocation2], %s196
        %p198 = pneg %p57
        %p199 = pneg %p54
        %s200 = sand.u32 %s72, 1
        %s201 = scalar_lea.sflag [#allocation6], %s200
        %s202 = sand.u32 %s72, 1
        %s203 = smul.addr %s202, 8
        %s204 = scalar_lea.vmem [#allocation5], %s203
        %p205 = pneg %p85
        %p206 = pneg %p82
        %p207 = pneg %p111
        %p208 = pneg %p108
        %s209 = sand.u32 %s98, 1
        %s210 = scalar_lea.sflag [#allocation4], %s209
        %s211 = sand.u32 %s98, 1
        %s212 = smul.addr %s211, 4
        %s213 = scalar_lea.vmem [#allocation7], %s212
        %p214 = scmp.eq.s32.totalorder %s27, 0
        // Predicated region
        $region37: #{tpu_custom_call.1} parent=27 // pred_check
          %p215 = pneg %p214
        $region38: #{tpu_custom_call.1} parent=27 // pred_check_branch
          %217 = sbr.rel (%p215) target = $region40
        $region39: #{tpu_custom_call.1} parent=27 // pred_region
          %218 = vst [vmem:[%s213] sm:$0xf] 0.0
        $region40: #{tpu_custom_call.1} parent=27 // pred_fallthru
          _
        %v219 = vld [vmem:[%s179] sm:$0xff]
        %v220 = vld [vmem:[%s188] sm:$0xff]
        %v221 = vlog2.pop %v219
        %v222 = vmul.f32 %v221, 0.6931472
        %v223 = vmax.f32 %v222, -100.0
        %v224 = vsub.f32 1.0, %v219
        %v225 = vlog2.pop %v224
        %v226 = vmul.f32 %v225, 0.6931472
        %v227 = vmax.f32 %v226, -100.0
        %v228 = vmul.f32 %v220, %v223
        %v229 = vsub.f32 1.0, %v220
        %v230 = vmul.f32 %v229, %v227
        %v231 = vadd.f32 %v228, %v230
        %v232 = vsub.f32 0.0, %v231
        %v233 = vrot.slane %v232, 4
        %v234 = vadd.f32 %v232, %v233
        %v235 = vrot.slane %v234, 2
        %v236 = vadd.f32 %v234, %v235
        %v237 = vrot.slane %v236, 1
        %v238 = vadd.f32 %v236, %v237
        %v239 = vmul.f32 %v219, %v220
        %v240 = vrot.slane %v239, 4
        %v241 = vadd.f32 %v239, %v240
        %v242 = vrot.slane %v241, 2
        %v243 = vadd.f32 %v241, %v242
        %v244 = vrot.slane %v243, 1
        %v245 = vadd.f32 %v243, %v244
        %v246 = vrot.slane %v219, 4
        %v247 = vadd.f32 %v219, %v246
        %v248 = vrot.slane %v247, 2
        %v249 = vadd.f32 %v247, %v248
        %v250 = vrot.slane %v249, 1
        %v251 = vadd.f32 %v249, %v250
        %v252 = vrot.slane %v220, 4
        %v253 = vadd.f32 %v220, %v252
        %v254 = vrot.slane %v253, 2
        %v255 = vadd.f32 %v253, %v254
        %v256 = vrot.slane %v255, 1
        %v257 = vadd.f32 %v255, %v256
        %vm258 = vcmask 1040384
        %v259 = vsel %vm258, %v238, %v245
        %vm260 = vcmask 1041408
        %v261 = vsel %vm260, %v259, %v251
        %vm262 = vcmask 1042432
        %v263 = vsel %vm262, %v261, %v257
        %v264 = vld [vmem:[%s213] sm:$0xf]
        %v265 = vadd.f32 %v264, %v263
        %266 = vst [vmem:[%s213] sm:$0xf] %v265
        %s267 = sand.u32 %s98, 1
        %s268 = scalar_lea.sflag [#allocation4], %s267
        %s269 = sand.u32 %s98, 1
        %s270 = smul.addr %s269, 4
        %s271 = scalar_lea.vmem [#allocation7], %s270
        // Predicated region
        $region41: #{tpu_custom_call.1} parent=27 // pred_check
          %p272 = pneg %p108
        $region42: #{tpu_custom_call.1} parent=27 // pred_check_branch
          %274 = sbr.rel (%p272) target = $region44
        $region43: #{tpu_custom_call.1} parent=27 // pred_region
          %s276 = ssub.s32 64, 64
          %277 = vsyncadd %s268, %s276
          %s278 = smul.addr %s26, 64
          %s279 = scalar_lea.hbm %s2, %s278
          %s281 = sshll.u32 %s271, 4
          %s282 = int_to_ptr.vmem [resolvable:$true] %s281
          %284 = dma.vmem_to_hbm [thread:$0]  %s282, 64, %s279, %s268
        $region44: #{tpu_custom_call.1} parent=27 // pred_fallthru
          _
      $region28: #{tpu_custom_call.1} parent=5 // pred_fallthru
        _
      %p285 = scmp.le.s32.totalorder 2, %s17
      // Predicated region
      $region45: #{tpu_custom_call.1} parent=5 // pred_check
        %p286 = pneg %p285
      $region46: #{tpu_custom_call.1} parent=5 // pred_check_branch
        %288 = sbr.rel (%p286) target = $region48
      $region47: #{tpu_custom_call.1} parent=5 // pred_region
        %s289 = ssub.s32 %s17, 2
        // Predicated region
        $region49: #{tpu_custom_call.1} parent=47 // pred_check
          %p290 = pneg %p114
        $region50: #{tpu_custom_call.1} parent=47 // pred_check_branch
          %292 = sbr.rel (%p290) target = $region52
        $region51: #{tpu_custom_call.1} parent=47 // pred_region
          %s293 = sand.u32 %s99, 1
          %s294 = scalar_lea.sflag [#allocation4], %s293
          %s295 = sand.u32 %s99, 1
          %s296 = smul.addr %s295, 4
          %s297 = scalar_lea.vmem [#allocation7], %s296
          %298 = dma.done %s294, 64
        $region52: #{tpu_custom_call.1} parent=47 // pred_fallthru
          _
      $region48: #{tpu_custom_call.1} parent=5 // pred_fallthru
        _
    $region6: #{tpu_custom_call.1} parent=1 // loop_footer
      %s21 = sadd.s32 1, %s17
    $region7: #{tpu_custom_call.1} parent=1 // loop_footer_branch
      %16 = sbr.rel target = $region3
    $region8: #{tpu_custom_call.1} parent=1 // loop_exit
      _
    %299 = vsyncpa [#allocation3], 1
    %s300 = scalar_lea.sflag [#allocation3], 1
    %301 = vsyncpa %s300, 1
    %302 = vsyncpa [#allocation6], 1
    %s303 = scalar_lea.sflag [#allocation6], 1
    %304 = vsyncpa %s303, 1
    %305 = vsyncpa [#allocation4], 1
    %s306 = scalar_lea.sflag [#allocation4], 1
    %307 = vsyncpa %s306, 1

</llo_original>
